<compile_context>
chip_gen: v7x
topology: tpu7x:2x2x1
jax: 0.10.0
libtpu: 0.0.40
codegen_flags: <defaults>
</compile_context>

<pallas_src>
import jax
import jax.numpy as jnp
from jax.experimental import pallas as pl
from jax.experimental.pallas import tpu as pltpu

LANE = 128          # lane width of the (rows, 128) I/O slabs
MULTI = 1024        # multi-tile row granularity (tb // 128 must be a multiple of 8)


def _round_up(n, m):
    return ((n + m - 1) // m) * m


def _mlp_kernel(x_ref, w1_ref, b1_ref, w2_ref, b2_ref, w3_ref, b3_ref,
                w4_ref, b4_ref, o_ref):
    tr, lanes = x_ref.shape                       # lane-dense slab: (tr, 128)
    tb = tr * lanes                               # rows of the logical batch tile

    # Lane-dense slab -> (tb, 1) column of scalar inputs (row-major).
    x = x_ref[...].reshape(tb, 1)

    # Layer 1: contraction depth K=1 -> pure VPU broadcast (tb,1)*(1,64), no MXU.
    h1 = jnp.maximum(x * w1_ref[...] + b1_ref[...], 0.0)            # (tb, 64) f32

    # Layers 2 & 3: bf16 MXU operands, f32 accumulation.
    h2 = jnp.dot(h1.astype(jnp.bfloat16), w2_ref[...],
                 preferred_element_type=jnp.float32) + b2_ref[...]
    h2 = jnp.maximum(h2, 0.0)                                        # (tb, 128) f32

    h3 = jnp.dot(h2.astype(jnp.bfloat16), w3_ref[...],
                 preferred_element_type=jnp.float32) + b3_ref[...]
    h3 = jnp.maximum(h3, 0.0)                                        # (tb, 64) f32

    # Layer 4: output width N=1 -> VPU multiply + lane (XLU) reduction, no MXU.
    # Bias is a scalar read from SMEM.
    y = jnp.sum(h3 * w4_ref[...], axis=-1, keepdims=True) + b4_ref[0, 0]  # (tb, 1)

    # Store lane-dense (unmasked vst, wide writeback DMA).
    o_ref[...] = y.reshape(tr, lanes).astype(o_ref.dtype)


def linear_regression_model(x, params, block_rows=4096):
    """Forward pass of LinearRegressionModel.

    x: (batch, 1) float32
    params: w1 (1,64), b1 (1,64), w2 (64,128), b2 (1,128), w3 (128,64), b3 (1,64),
            w4 (64,1), b4 (1,1)   -- weights stored as (in_features, out_features)
    returns: (batch, 1) float32
    """
    assert x.ndim == 2 and x.shape[1] == 1, "kernel specialised to in_1 == 1"
    assert params["w1"].shape[0] == 1 and params["w4"].shape[1] == 1, \
        "kernel specialised to in_1 == output == 1"

    x = x.astype(jnp.float32)
    batch = x.shape[0]

    if batch <= MULTI:
        # Single tile: block == full array, so only 128-lane alignment is needed.
        tb = _round_up(max(batch, 1), LANE)
        batch_p = tb
    else:
        # Multi-tile: tiles must be multiples of 1024 rows ((8,128) rule on the
        # reshaped (rows,128) slab).  Cap at ceil(batch/2) so the parallel batch
        # axis always has >= 2 steps (both v7x TensorCores get work).
        br = max(MULTI, _round_up(block_rows, MULTI))
        tb = min(br, _round_up(pl.cdiv(batch, 2), MULTI))
        batch_p = _round_up(batch, tb)

    if batch_p != batch:
        x = jnp.pad(x, ((0, batch_p - batch), (0, 0)))

    tr = tb // LANE
    rows_p = batch_p // LANE
    grid = (batch_p // tb,)

    # Lane-dense input slab (row-major reshape is free in XLA).
    x2 = x.reshape(rows_p, LANE)

    w1 = params["w1"].astype(jnp.float32)          # (1, 64)
    b1 = params["b1"].astype(jnp.float32)          # (1, 64)
    w2 = params["w2"].astype(jnp.bfloat16)         # (64, 128)  bf16 MXU operand
    b2 = params["b2"].astype(jnp.float32)          # (1, 128)
    w3 = params["w3"].astype(jnp.bfloat16)         # (128, 64)  bf16 MXU operand
    b3 = params["b3"].astype(jnp.float32)          # (1, 64)
    w4_row = params["w4"].T.astype(jnp.float32)    # (1, 64) row for VPU mul + reduce
    b4 = params["b4"].astype(jnp.float32)          # (1, 1) -> SMEM scalar

    def resident(arr):   # full-array block, constant index -> stays in VMEM across steps
        return pl.BlockSpec(arr.shape, lambda i: (0, 0))

    out2 = pl.pallas_call(
        _mlp_kernel,
        out_shape=jax.ShapeDtypeStruct((rows_p, LANE), jnp.float32),
        grid=grid,
        in_specs=[
            pl.BlockSpec((tr, LANE), lambda i: (i, 0)),      # x: streamed, lane-dense
            resident(w1), resident(b1),
            resident(w2), resident(b2),
            resident(w3), resident(b3),
            resident(w4_row),
            pl.BlockSpec(memory_space=pltpu.MemorySpace.SMEM),   # b4 scalar
        ],
        out_specs=pl.BlockSpec((tr, LANE), lambda i: (i, 0)),    # lane-dense output
        compiler_params=pltpu.CompilerParams(
            dimension_semantics=("parallel",),               # megacore split on v7x
            vmem_limit_bytes=32 << 20,
        ),
    )(x2, w1, b1, w2, b2, w3, b3, w4_row, b4)

    return out2.reshape(batch_p, 1)[:batch]


def init_params(key, in_1=1, out_1=64, out_2=128, out_3=64, output=1):
    """Deterministic init mimicking nn.Linear's uniform(-1/sqrt(fan_in), 1/sqrt(fan_in))."""
    keys = jax.random.split(key, 8)

    def linear(kw, kb, fan_in, fan_out):
        bound = 1.0 / jnp.sqrt(float(fan_in))
        w = jax.random.uniform(kw, (fan_in, fan_out), jnp.float32, -bound, bound)
        b = jax.random.uniform(kb, (1, fan_out), jnp.float32, -bound, bound)
        return w, b

    w1, b1 = linear(keys[0], keys[1], in_1, out_1)
    w2, b2 = linear(keys[2], keys[3], out_1, out_2)
    w3, b3 = linear(keys[4], keys[5], out_2, out_3)
    w4, b4 = linear(keys[6], keys[7], out_3, output)
    return dict(w1=w1, b1=b1, w2=w2, b2=b2, w3=w3, b3=b3, w4=w4, b4=b4)


def reference_forward(x, p):
    """Reference with the same bf16-operand / f32-accumulate matmul numerics."""
    h = jnp.maximum(x @ p["w1"] + p["b1"], 0.0)
    h = jnp.maximum(
        jnp.dot(h.astype(jnp.bfloat16), p["w2"].astype(jnp.bfloat16),
                preferred_element_type=jnp.float32) + p["b2"], 0.0)
    h = jnp.maximum(
        jnp.dot(h.astype(jnp.bfloat16), p["w3"].astype(jnp.bfloat16),
                preferred_element_type=jnp.float32) + p["b3"], 0.0)
    return h @ p["w4"] + p["b4"]


if __name__ == "__main__":
    key = jax.random.PRNGKey(0)
    k_params, k_x1, k_x2 = jax.random.split(key, 3)

    params = init_params(k_params)

    # Small smoke test (single tile; batch padded 8 -> 128 lanes, sliced back).
    x_small = jax.random.normal(k_x1, (8, 1), jnp.float32)
    y_small = jax.block_until_ready(linear_regression_model(x_small, params))
    y_small_ref = reference_forward(x_small, params)
    assert y_small.shape == (8, 1), y_small.shape
    assert jnp.allclose(y_small, y_small_ref, atol=2e-3, rtol=2e-3), "small-batch mismatch"

    # Multi-tile test: exercises the batch grid (grid=(3,)), padding, lane-dense
    # I/O slabs and the parallel batch axis.
    x_big = jax.random.normal(k_x2, (2500, 1), jnp.float32)
    y_big = jax.block_until_ready(
        linear_regression_model(x_big, params, block_rows=1024))
    y_big_ref = reference_forward(x_big, params)
    assert y_big.shape == (2500, 1), y_big.shape
    assert jnp.allclose(y_big, y_big_ref, atol=2e-3, rtol=2e-3), "multi-tile mismatch"

    print("KERNEL_OK")
</pallas_src>

<mosaic_0001>
module attributes {stable_mosaic.version = 11 : i64} {
  func.func @_mlp_kernel(%arg0: i32, %arg1: memref<1x128xf32, #tpu.memory_space<vmem>>, %arg2: memref<1x64xf32, #tpu.memory_space<vmem>>, %arg3: memref<1x64xf32, #tpu.memory_space<vmem>>, %arg4: memref<64x128xbf16, #tpu.memory_space<vmem>>, %arg5: memref<1x128xf32, #tpu.memory_space<vmem>>, %arg6: memref<128x64xbf16, #tpu.memory_space<vmem>>, %arg7: memref<1x64xf32, #tpu.memory_space<vmem>>, %arg8: memref<1x64xf32, #tpu.memory_space<vmem>>, %arg9: memref<1x1xf32, #tpu.memory_space<smem>>, %arg10: memref<1x128xf32, #tpu.memory_space<vmem>>) attributes {dimension_semantics = [#tpu.dimension_semantics<parallel>], iteration_bounds = array<i64: 1>, scalar_prefetch = 0 : i64, scratch_operands = 0 : i64, tpu.core_type = #tpu.core_type<tc>, window_params = [{transform_indices = @transform_0, window_bounds = array<i64: 1, 128>}, {pipeline_mode = #tpu.pipeline_mode<synchronous>, transform_indices = @transform_1, window_bounds = array<i64: 1, 64>}, {pipeline_mode = #tpu.pipeline_mode<synchronous>, transform_indices = @transform_2, window_bounds = array<i64: 1, 64>}, {pipeline_mode = #tpu.pipeline_mode<synchronous>, transform_indices = @transform_3, window_bounds = array<i64: 64, 128>}, {pipeline_mode = #tpu.pipeline_mode<synchronous>, transform_indices = @transform_4, window_bounds = array<i64: 1, 128>}, {pipeline_mode = #tpu.pipeline_mode<synchronous>, transform_indices = @transform_5, window_bounds = array<i64: 128, 64>}, {pipeline_mode = #tpu.pipeline_mode<synchronous>, transform_indices = @transform_6, window_bounds = array<i64: 1, 64>}, {pipeline_mode = #tpu.pipeline_mode<synchronous>, transform_indices = @transform_7, window_bounds = array<i64: 1, 64>}, {transform_indices = @transform_8, window_bounds = array<i64: 1, 1>}, {transform_indices = @transform_9, window_bounds = array<i64: 1, 128>}]} {
    %c0 = arith.constant 0 : index
    %c0_0 = arith.constant 0 : index
    %0 = vector.load %arg1[%c0, %c0_0] : memref<1x128xf32, #tpu.memory_space<vmem>>, vector<1x128xf32>
    %1 = vector.shape_cast %0 : vector<1x128xf32> to vector<128x1xf32>
    %c0_1 = arith.constant 0 : index
    %c0_2 = arith.constant 0 : index
    %2 = vector.load %arg2[%c0_1, %c0_2] : memref<1x64xf32, #tpu.memory_space<vmem>>, vector<1x64xf32>
    %3 = vector.broadcast %1 : vector<128x1xf32> to vector<128x64xf32>
    %4 = vector.broadcast %2 : vector<1x64xf32> to vector<128x64xf32>
    %5 = arith.mulf %3, %4 : vector<128x64xf32>
    %c0_3 = arith.constant 0 : index
    %c0_4 = arith.constant 0 : index
    %6 = vector.load %arg3[%c0_3, %c0_4] : memref<1x64xf32, #tpu.memory_space<vmem>>, vector<1x64xf32>
    %7 = vector.broadcast %6 : vector<1x64xf32> to vector<128x64xf32>
    %8 = arith.addf %5, %7 : vector<128x64xf32>
    %cst = arith.constant 0.000000e+00 : f32
    %9 = vector.broadcast %cst : f32 to vector<128x64xf32>
    %10 = arith.maximumf %8, %9 : vector<128x64xf32>
    %11 = arith.truncf %10 : vector<128x64xf32> to vector<128x64xbf16>
    %c0_5 = arith.constant 0 : index
    %c0_6 = arith.constant 0 : index
    %12 = vector.load %arg4[%c0_5, %c0_6] : memref<64x128xbf16, #tpu.memory_space<vmem>>, vector<64x128xbf16>
    %cst_7 = arith.constant dense<0.000000e+00> : vector<128x128xf32>
    %13 = tpu.matmul %11, %12, %cst_7 {dimension_numbers = #tpu.dot_dimension_numbers<[1], [0], [0], [1], [0, 0, 1, 1], [], []>} : vector<128x64xbf16>, vector<64x128xbf16>, vector<128x128xf32> -> vector<128x128xf32>
    %c0_8 = arith.constant 0 : index
    %c0_9 = arith.constant 0 : index
    %14 = vector.load %arg5[%c0_8, %c0_9] : memref<1x128xf32, #tpu.memory_space<vmem>>, vector<1x128xf32>
    %15 = vector.broadcast %14 : vector<1x128xf32> to vector<128x128xf32>
    %16 = arith.addf %13, %15 : vector<128x128xf32>
    %cst_10 = arith.constant 0.000000e+00 : f32
    %17 = vector.broadcast %cst_10 : f32 to vector<128x128xf32>
    %18 = arith.maximumf %16, %17 : vector<128x128xf32>
    %19 = arith.truncf %18 : vector<128x128xf32> to vector<128x128xbf16>
    %c0_11 = arith.constant 0 : index
    %c0_12 = arith.constant 0 : index
    %20 = vector.load %arg6[%c0_11, %c0_12] : memref<128x64xbf16, #tpu.memory_space<vmem>>, vector<128x64xbf16>
    %cst_13 = arith.constant dense<0.000000e+00> : vector<128x64xf32>
    %21 = tpu.matmul %19, %20, %cst_13 {dimension_numbers = #tpu.dot_dimension_numbers<[1], [0], [0], [1], [0, 0, 1, 1], [], []>} : vector<128x128xbf16>, vector<128x64xbf16>, vector<128x64xf32> -> vector<128x64xf32>
    %c0_14 = arith.constant 0 : index
    %c0_15 = arith.constant 0 : index
    %22 = vector.load %arg7[%c0_14, %c0_15] : memref<1x64xf32, #tpu.memory_space<vmem>>, vector<1x64xf32>
    %23 = vector.broadcast %22 : vector<1x64xf32> to vector<128x64xf32>
    %24 = arith.addf %21, %23 : vector<128x64xf32>
    %cst_16 = arith.constant 0.000000e+00 : f32
    %25 = vector.broadcast %cst_16 : f32 to vector<128x64xf32>
    %26 = arith.maximumf %24, %25 : vector<128x64xf32>
    %c0_17 = arith.constant 0 : index
    %c0_18 = arith.constant 0 : index
    %27 = vector.load %arg8[%c0_17, %c0_18] : memref<1x64xf32, #tpu.memory_space<vmem>>, vector<1x64xf32>
    %28 = vector.broadcast %27 : vector<1x64xf32> to vector<128x64xf32>
    %29 = arith.mulf %26, %28 : vector<128x64xf32>
    %cst_19 = arith.constant dense<0.000000e+00> : vector<128xf32>
    %30 = vector.multi_reduction <add>, %29, %cst_19 [1] : vector<128x64xf32> to vector<128xf32>
    %31 = vector.shape_cast %30 : vector<128xf32> to vector<128x1xf32>
    %c0_20 = arith.constant 0 : index
    %c0_21 = arith.constant 0 : index
    %32 = memref.load %arg9[%c0_20, %c0_21] : memref<1x1xf32, #tpu.memory_space<smem>>
    %33 = vector.broadcast %32 : f32 to vector<128x1xf32>
    %34 = arith.addf %31, %33 : vector<128x1xf32>
    %35 = vector.shape_cast %34 : vector<128x1xf32> to vector<1x128xf32>
    %c0_22 = arith.constant 0 : index
    %c0_23 = arith.constant 0 : index
    %36 = vector.load %arg10[%c0_22, %c0_23] : memref<1x128xf32, #tpu.memory_space<vmem>>, vector<1x128xf32>
    tpu.vector_store %arg10[%c0_22, %c0_23], %35 {strides = array<i32>} : memref<1x128xf32, #tpu.memory_space<vmem>>, vector<1x128xf32>,
    return
  }
  func.func @transform_0(%arg0: i32) -> (i32, i32) {
    %c0_i32 = arith.constant 0 : i32
    %c0_i32_0 = arith.constant 0 : i32
    return %arg0, %c0_i32 : i32, i32
  }
  func.func @transform_1(%arg0: i32) -> (i32, i32) {
    %c0_i32 = arith.constant 0 : i32
    %c0_i32_0 = arith.constant 0 : i32
    %c0_i32_1 = arith.constant 0 : i32
    return %c0_i32, %c0_i32_0 : i32, i32
  }
  func.func @transform_2(%arg0: i32) -> (i32, i32) {
    %c0_i32 = arith.constant 0 : i32
    %c0_i32_0 = arith.constant 0 : i32
    %c0_i32_1 = arith.constant 0 : i32
    return %c0_i32, %c0_i32_0 : i32, i32
  }
  func.func @transform_3(%arg0: i32) -> (i32, i32) {
    %c0_i32 = arith.constant 0 : i32
    %c0_i32_0 = arith.constant 0 : i32
    %c0_i32_1 = arith.constant 0 : i32
    return %c0_i32, %c0_i32_0 : i32, i32
  }
  func.func @transform_4(%arg0: i32) -> (i32, i32) {
    %c0_i32 = arith.constant 0 : i32
    %c0_i32_0 = arith.constant 0 : i32
    %c0_i32_1 = arith.constant 0 : i32
    return %c0_i32, %c0_i32_0 : i32, i32
  }
  func.func @transform_5(%arg0: i32) -> (i32, i32) {
    %c0_i32 = arith.constant 0 : i32
    %c0_i32_0 = arith.constant 0 : i32
    %c0_i32_1 = arith.constant 0 : i32
    return %c0_i32, %c0_i32_0 : i32, i32
  }
  func.func @transform_6(%arg0: i32) -> (i32, i32) {
    %c0_i32 = arith.constant 0 : i32
    %c0_i32_0 = arith.constant 0 : i32
    %c0_i32_1 = arith.constant 0 : i32
    return %c0_i32, %c0_i32_0 : i32, i32
  }
  func.func @transform_7(%arg0: i32) -> (i32, i32) {
    %c0_i32 = arith.constant 0 : i32
    %c0_i32_0 = arith.constant 0 : i32
    %c0_i32_1 = arith.constant 0 : i32
    return %c0_i32, %c0_i32_0 : i32, i32
  }
  func.func @transform_8(%arg0: i32) -> (i32, i32) {
    %c0_i32 = arith.constant 0 : i32
    %c0_i32_0 = arith.constant 0 : i32
    %c0_i32_1 = arith.constant 0 : i32
    return %c0_i32, %c0_i32_0 : i32, i32
  }
  func.func @transform_9(%arg0: i32) -> (i32, i32) {
    %c0_i32 = arith.constant 0 : i32
    %c0_i32_0 = arith.constant 0 : i32
    return %arg0, %c0_i32 : i32, i32
  }
}

</mosaic_0001>

<llo_original>
// kernel: tpu_custom_call.1
$region0: #{tpu_custom_call.1}
  #allocation0 [shape = 'u32[]', space=smem, size = 0x4, offset = 0x4, fixed_abs, tag = 'smem constant byte address 0x4 - core index']
  #allocation1 [shape = 'u32[144,128]{1,0:T(1,128)}', space=vmem, size = 0x12000, scoped, tag = 'internal scratch']
  #allocation2 [shape = 'f32[1,1]{1,0:T(1,128)S(6)}', space=smem, size = 0x200, scoped, tag = 'scoped memory for tpu_custom_call.1']
  %s0 = inlined_call_operand.vmem [shape: f32[1,128], index: 0, kind: input, shape index: {}]
  %s1 = inlined_call_operand.vmem [shape: f32[1,64], index: 1, kind: input, shape index: {}]
  %s2 = inlined_call_operand.vmem [shape: f32[1,64], index: 2, kind: input, shape index: {}]
  %s3 = inlined_call_operand.vmem [shape: bf16[64,128], index: 3, kind: input, shape index: {}]
  %s4 = inlined_call_operand.vmem [shape: f32[1,128], index: 4, kind: input, shape index: {}]
  %s5 = inlined_call_operand.vmem [shape: bf16[128,64], index: 5, kind: input, shape index: {}]
  %s6 = inlined_call_operand.vmem [shape: f32[1,64], index: 6, kind: input, shape index: {}]
  %s7 = inlined_call_operand.vmem [shape: f32[1,64], index: 7, kind: input, shape index: {}]
  %s8 = inlined_call_operand.<no memory space> [shape: f32[1,1], index: 8, kind: input, shape index: {}]
  %s9 = inlined_call_operand.hbm [shape: f32[1,128], index: 9, kind: output, shape index: {}]
  %s10 = sld [smem:[#allocation0]]
  $region46: #{tpu_custom_call.1} parent=0
    _
  %s12 = ssub.s32 1, %s10
  %s13 = scalar_select 0, %s12, %s10
  %14 = sst [smem:[#allocation2]] %s8
  $region1: #{tpu_custom_call.1} parent=0
    #allocation3 [shape = 'u8[512]{0}', space=vmem, size = 0x400, scoped, tag = 'output window, operand 0, single buffered']
    #allocation4 [shape = 's32[1]{0}', space=sflag, size = 0x4, scoped, tag = 'scoped memory for tpu_custom_call.1']
    %15 = vsyncpa [#allocation4], 0
    // Predicated region
    $region2: #{tpu_custom_call.1} parent=1 // pred_check
      _
    $region3: #{tpu_custom_call.1} parent=1 // pred_check_branch
      %17 = sbr.rel (0) target = $region5
    $region4: #{tpu_custom_call.1} parent=1 // pred_region
      _
    $region5: #{tpu_custom_call.1} parent=1 // pred_fallthru
      _
    // Predicated region
    $region6: #{tpu_custom_call.1} parent=1 // pred_check
      _
    $region7: #{tpu_custom_call.1} parent=1 // pred_check_branch
      %19 = sbr.rel (0) target = $region9
    $region8: #{tpu_custom_call.1} parent=1 // pred_region
      _
    $region9: #{tpu_custom_call.1} parent=1 // pred_fallthru
      _
    // Predicated region
    $region10: #{tpu_custom_call.1} parent=1 // pred_check
      _
    $region11: #{tpu_custom_call.1} parent=1 // pred_check_branch
      %21 = sbr.rel (0) target = $region13
    $region12: #{tpu_custom_call.1} parent=1 // pred_region
      _
    $region13: #{tpu_custom_call.1} parent=1 // pred_fallthru
      _
    // Predicated region
    $region14: #{tpu_custom_call.1} parent=1 // pred_check
      _
    $region15: #{tpu_custom_call.1} parent=1 // pred_check_branch
      %23 = sbr.rel (0) target = $region17
    $region16: #{tpu_custom_call.1} parent=1 // pred_region
      _
    $region17: #{tpu_custom_call.1} parent=1 // pred_fallthru
      _
    // Predicated region
    $region18: #{tpu_custom_call.1} parent=1 // pred_check
      _
    $region19: #{tpu_custom_call.1} parent=1 // pred_check_branch
      %25 = sbr.rel (0) target = $region21
    $region20: #{tpu_custom_call.1} parent=1 // pred_region
      _
    $region21: #{tpu_custom_call.1} parent=1 // pred_fallthru
      _
    // Predicated region
    $region22: #{tpu_custom_call.1} parent=1 // pred_check
      _
    $region23: #{tpu_custom_call.1} parent=1 // pred_check_branch
      %27 = sbr.rel (0) target = $region25
    $region24: #{tpu_custom_call.1} parent=1 // pred_region
      _
    $region25: #{tpu_custom_call.1} parent=1 // pred_fallthru
      _
    // Predicated region
    $region26: #{tpu_custom_call.1} parent=1 // pred_check
      _
    $region27: #{tpu_custom_call.1} parent=1 // pred_check_branch
      %29 = sbr.rel (0) target = $region29
    $region28: #{tpu_custom_call.1} parent=1 // pred_region
      _
    $region29: #{tpu_custom_call.1} parent=1 // pred_fallthru
      _
    // Predicated region
    $region30: #{tpu_custom_call.1} parent=1 // pred_check
      _
    $region31: #{tpu_custom_call.1} parent=1 // pred_check_branch
      %31 = sbr.rel (0) target = $region33
    $region32: #{tpu_custom_call.1} parent=1 // pred_region
      _
    $region33: #{tpu_custom_call.1} parent=1 // pred_fallthru
      _
    // Predicated region
    $region34: #{tpu_custom_call.1} parent=1 // pred_check
      _
    $region35: #{tpu_custom_call.1} parent=1 // pred_check_branch
      %33 = sbr.rel (0) target = $region37
    $region36: #{tpu_custom_call.1} parent=1 // pred_region
      _
    $region37: #{tpu_custom_call.1} parent=1 // pred_fallthru
      _
    %v35 = vld [vmem:[%s0] sm:$0x1]
    %v36 = vlaneseq
    %v37 = vshrl.u32 %v36, 7
    %v38 = vsub.s32 0, %v37
    %v39 = vrot.slane %v35, %v38
    %41 = vbcast.lane.b32.xlu0 %v39, 256
    %v42 = vpop.permute.xlu0 %41
    %s44 = sor.u32 256, 8
    %45 = vbcast.lane.b32.xlu0 %v39, %s44
    %v46 = vpop.permute.xlu0 %45
    %s48 = sor.u32 256, 16
    %49 = vbcast.lane.b32.xlu0 %v39, %s48
    %v50 = vpop.permute.xlu0 %49
    %s52 = sor.u32 256, 24
    %53 = vbcast.lane.b32.xlu0 %v39, %s52
    %v54 = vpop.permute.xlu0 %53
    %s56 = sor.u32 256, 32
    %57 = vbcast.lane.b32.xlu0 %v39, %s56
    %v58 = vpop.permute.xlu0 %57
    %s60 = sor.u32 256, 40
    %61 = vbcast.lane.b32.xlu0 %v39, %s60
    %v62 = vpop.permute.xlu0 %61
    %s64 = sor.u32 256, 48
    %65 = vbcast.lane.b32.xlu0 %v39, %s64
    %v66 = vpop.permute.xlu0 %65
    %s68 = sor.u32 256, 56
    %69 = vbcast.lane.b32.xlu0 %v39, %s68
    %v70 = vpop.permute.xlu0 %69
    %s72 = sor.u32 256, 64
    %73 = vbcast.lane.b32.xlu0 %v39, %s72
    %v74 = vpop.permute.xlu0 %73
    %s76 = sor.u32 256, 72
    %77 = vbcast.lane.b32.xlu0 %v39, %s76
    %v78 = vpop.permute.xlu0 %77
    %s80 = sor.u32 256, 80
    %81 = vbcast.lane.b32.xlu0 %v39, %s80
    %v82 = vpop.permute.xlu0 %81
    %s84 = sor.u32 256, 88
    %85 = vbcast.lane.b32.xlu0 %v39, %s84
    %v86 = vpop.permute.xlu0 %85
    %s88 = sor.u32 256, 96
    %89 = vbcast.lane.b32.xlu0 %v39, %s88
    %v90 = vpop.permute.xlu0 %89
    %s92 = sor.u32 256, 104
    %93 = vbcast.lane.b32.xlu0 %v39, %s92
    %v94 = vpop.permute.xlu0 %93
    %s96 = sor.u32 256, 112
    %97 = vbcast.lane.b32.xlu0 %v39, %s96
    %v98 = vpop.permute.xlu0 %97
    %s100 = sor.u32 256, 120
    %101 = vbcast.lane.b32.xlu0 %v39, %s100
    %v102 = vpop.permute.xlu0 %101
    %v103 = vld [vmem:[%s1] sm:$0x1]
    %v105 = vlaneseq
    %v106 = vshrl.u32 %v105, 7
    %v107 = vsub.s32 0, %v106
    %v108 = vrot.slane %v103, %v107
    %v110 = vmul.f32 %v42, %v108
    %v111 = vmul.f32 %v46, %v108
    %v112 = vmul.f32 %v50, %v108
    %v113 = vmul.f32 %v54, %v108
    %v114 = vmul.f32 %v58, %v108
    %v115 = vmul.f32 %v62, %v108
    %v116 = vmul.f32 %v66, %v108
    %v117 = vmul.f32 %v70, %v108
    %v118 = vmul.f32 %v74, %v108
    %v119 = vmul.f32 %v78, %v108
    %v120 = vmul.f32 %v82, %v108
    %v121 = vmul.f32 %v86, %v108
    %v122 = vmul.f32 %v90, %v108
    %v123 = vmul.f32 %v94, %v108
    %v124 = vmul.f32 %v98, %v108
    %v125 = vmul.f32 %v102, %v108
    %v126 = vld [vmem:[%s2] sm:$0x1]
    %v128 = vlaneseq
    %v129 = vshrl.u32 %v128, 7
    %v130 = vsub.s32 0, %v129
    %v131 = vrot.slane %v126, %v130
    %v133 = vadd.f32 %v110, %v131
    %v134 = vadd.f32 %v111, %v131
    %v135 = vadd.f32 %v112, %v131
    %v136 = vadd.f32 %v113, %v131
    %v137 = vadd.f32 %v114, %v131
    %v138 = vadd.f32 %v115, %v131
    %v139 = vadd.f32 %v116, %v131
    %v140 = vadd.f32 %v117, %v131
    %v141 = vadd.f32 %v118, %v131
    %v142 = vadd.f32 %v119, %v131
    %v143 = vadd.f32 %v120, %v131
    %v144 = vadd.f32 %v121, %v131
    %v145 = vadd.f32 %v122, %v131
    %v146 = vadd.f32 %v123, %v131
    %v147 = vadd.f32 %v124, %v131
    %v148 = vadd.f32 %v125, %v131
    %v149 = vmax.f32 %v133, 0.0
    %v150 = vmax.f32 %v134, 0.0
    %v151 = vmax.f32 %v135, 0.0
    %v152 = vmax.f32 %v136, 0.0
    %v153 = vmax.f32 %v137, 0.0
    %v154 = vmax.f32 %v138, 0.0
    %v155 = vmax.f32 %v139, 0.0
    %v156 = vmax.f32 %v140, 0.0
    %v157 = vmax.f32 %v141, 0.0
    %v158 = vmax.f32 %v142, 0.0
    %v159 = vmax.f32 %v143, 0.0
    %v160 = vmax.f32 %v144, 0.0
    %v161 = vmax.f32 %v145, 0.0
    %v162 = vmax.f32 %v146, 0.0
    %v163 = vmax.f32 %v147, 0.0
    %v164 = vmax.f32 %v148, 0.0
    %v165 = vpack.c.bf16 %v150, %v149
    %v166 = vpack.c.bf16 %v152, %v151
    %v167 = vpack.c.bf16 %v154, %v153
    %v168 = vpack.c.bf16 %v156, %v155
    %v169 = vpack.c.bf16 %v158, %v157
    %v170 = vpack.c.bf16 %v160, %v159
    %v171 = vpack.c.bf16 %v162, %v161
    %v172 = vpack.c.bf16 %v164, %v163
    %v173 = vld [vmem:[%s3] sm:$0xf]
    %v174 = vld [vmem:[%s3 + $0x4] sm:$0xf]
    %v175 = vld [vmem:[%s3 + $0x8] sm:$0xf]
    %v176 = vld [vmem:[%s3 + $0xc] sm:$0xf]
    %v177 = vld [vmem:[%s3 + $0x10] sm:$0xf]
    %v178 = vld [vmem:[%s3 + $0x14] sm:$0xf]
    %v179 = vld [vmem:[%s3 + $0x18] sm:$0xf]
    %v180 = vld [vmem:[%s3 + $0x1c] sm:$0xf]
    %v181 = vld [vmem:[%s4] sm:$0x1]
    %v183 = vlaneseq
    %v184 = vshrl.u32 %v183, 7
    %v185 = vsub.s32 0, %v184
    %v186 = vrot.slane %v181, %v185
    %v196 = vunpack.c.l.b16 %v173
    %v197 = vunpack.c.l.b16 %v174
    %v198 = vunpack.c.l.b16 %v175
    %v199 = vunpack.c.l.b16 %v176
    %v200 = vunpack.c.l.b16 %v177
    %v201 = vunpack.c.l.b16 %v178
    %v202 = vunpack.c.l.b16 %v179
    %v203 = vunpack.c.l.b16 %v180
    %v204 = vpack.c.b16 %v197, %v196
    %v205 = vpack.c.b16 %v199, %v198
    %v206 = vpack.c.b16 %v201, %v200
    %v207 = vpack.c.b16 %v203, %v202
    %vm212 = vcmask 523264
    %v214 = vsel %vm212, %v165, 0
    %v217 = vsel %vm212, %v166, 0
    %v220 = vsel %vm212, %v167, 0
    %v223 = vsel %vm212, %v168, 0
    %v226 = vsel %vm212, %v169, 0
    %v229 = vsel %vm212, %v170, 0
    %v232 = vsel %vm212, %v171, 0
    %v235 = vsel %vm212, %v172, 0
    %237 = vmatprep.subr.bf16.mxu0 0
    %238 = vmatpush1.bf16.msra.mxu0 %v204
    %239 = vmatprep.subr.bf16.mxu0 0
    %240 = vmatpush1.bf16.msra.mxu0 %v205
    %241 = vmatprep.subr.bf16.mxu0 0
    %242 = vmatpush1.bf16.msra.mxu0 %v206
    %243 = vmatprep.subr.bf16.mxu0 0
    %244 = vmatpush1.bf16.msra.mxu0 %v207
    %245 = vmatprep.subr.bf16.mxu0 0
    %246 = vmatpush1.bf16.msra.mxu0 0
    %247 = vmatprep.subr.bf16.mxu0 0
    %248 = vmatpush1.bf16.msra.mxu0 0
    %249 = vmatprep.subr.bf16.mxu0 0
    %250 = vmatpush1.bf16.msra.mxu0 0
    %251 = vmatprep.subr.bf16.mxu0 0
    %252 = vmatpush1.bf16.msra.mxu0 0
    %253 = vmatprep.subr.bf16.mxu0 0
    %254 = vmatpush1.bf16.msra.mxu0 0
    %255 = vmatprep.subr.bf16.mxu0 0
    %256 = vmatpush1.bf16.msra.mxu0 0
    %257 = vmatprep.subr.bf16.mxu0 0
    %258 = vmatpush1.bf16.msra.mxu0 0
    %259 = vmatprep.subr.bf16.mxu0 0
    %260 = vmatpush1.bf16.msra.mxu0 0
    %261 = vmatprep.subr.bf16.mxu0 0
    %262 = vmatpush1.bf16.msra.mxu0 0
    %263 = vmatprep.subr.bf16.mxu0 0
    %264 = vmatpush1.bf16.msra.mxu0 0
    %265 = vmatprep.subr.bf16.mxu0 0
    %266 = vmatpush1.bf16.msra.mxu0 0
    %267 = vmatprep.subr.bf16.mxu0 0
    %268 = vmatpush1.bf16.msra.mxu0 0
    %269 = vmatprep.mubr.bf16.mxu0 0
    %270 = vmatmul.mubr.bf16.gmra.mrb[0].mxu0 %v214
    %v271 = vpop.f32.mrb[0].mxu0
    %v272 = vadd.f32 %v186, %v271
    %v273 = vpop.f32.mrb[0].mxu0
    %v274 = vpop.f32.mrb[0].mxu0
    %v275 = vadd.f32 %v186, %v274
    %v276 = vpop.f32.mrb[0].mxu0
    %277 = vmatprep.mubr.bf16.mxu0 0
    %278 = vmatmul.mubr.bf16.gmra.mrb[0].mxu0 %v217
    %v279 = vpop.f32.mrb[0].mxu0
    %v280 = vadd.f32 %v186, %v279
    %v281 = vpop.f32.mrb[0].mxu0
    %v282 = vpop.f32.mrb[0].mxu0
    %v283 = vadd.f32 %v186, %v282
    %v284 = vpop.f32.mrb[0].mxu0
    %285 = vmatprep.mubr.bf16.mxu0 0
    %286 = vmatmul.mubr.bf16.gmra.mrb[0].mxu0 %v220
    %v287 = vpop.f32.mrb[0].mxu0
    %v288 = vadd.f32 %v186, %v287
    %v289 = vpop.f32.mrb[0].mxu0
    %v290 = vpop.f32.mrb[0].mxu0
    %v291 = vadd.f32 %v186, %v290
    %v292 = vpop.f32.mrb[0].mxu0
    %293 = vmatprep.mubr.bf16.mxu0 0
    %294 = vmatmul.mubr.bf16.gmra.mrb[0].mxu0 %v223
    %v295 = vpop.f32.mrb[0].mxu0
    %v296 = vadd.f32 %v186, %v295
    %v297 = vpop.f32.mrb[0].mxu0
    %v298 = vpop.f32.mrb[0].mxu0
    %v299 = vadd.f32 %v186, %v298
    %v300 = vpop.f32.mrb[0].mxu0
    %301 = vmatprep.mubr.bf16.mxu0 0
    %302 = vmatmul.mubr.bf16.gmra.mrb[0].mxu0 %v226
    %v303 = vpop.f32.mrb[0].mxu0
    %v304 = vadd.f32 %v186, %v303
    %v305 = vpop.f32.mrb[0].mxu0
    %v306 = vpop.f32.mrb[0].mxu0
    %v307 = vadd.f32 %v186, %v306
    %v308 = vpop.f32.mrb[0].mxu0
    %309 = vmatprep.mubr.bf16.mxu0 0
    %310 = vmatmul.mubr.bf16.gmra.mrb[0].mxu0 %v229
    %v311 = vpop.f32.mrb[0].mxu0
    %v312 = vadd.f32 %v186, %v311
    %v313 = vpop.f32.mrb[0].mxu0
    %v314 = vpop.f32.mrb[0].mxu0
    %v315 = vadd.f32 %v186, %v314
    %v316 = vpop.f32.mrb[0].mxu0
    %317 = vmatprep.mubr.bf16.mxu0 0
    %318 = vmatmul.mubr.bf16.gmra.mrb[0].mxu0 %v232
    %v319 = vpop.f32.mrb[0].mxu0
    %v320 = vadd.f32 %v186, %v319
    %v321 = vpop.f32.mrb[0].mxu0
    %v322 = vpop.f32.mrb[0].mxu0
    %v323 = vadd.f32 %v186, %v322
    %v324 = vpop.f32.mrb[0].mxu0
    %325 = vmatprep.mubr.bf16.mxu0 0
    %326 = vmatmul.mubr.bf16.gmra.mrb[0].mxu0 %v235
    %v327 = vpop.f32.mrb[0].mxu0
    %v328 = vadd.f32 %v186, %v327
    %v329 = vpop.f32.mrb[0].mxu0
    %v330 = vpop.f32.mrb[0].mxu0
    %v331 = vadd.f32 %v186, %v330
    %v332 = vpop.f32.mrb[0].mxu0
    %333 = vdwg.mxu0
    %v334 = vmax.f32 %v272, 0.0
    %v335 = vmax.f32 %v275, 0.0
    %v336 = vmax.f32 %v280, 0.0
    %v337 = vmax.f32 %v283, 0.0
    %v338 = vmax.f32 %v288, 0.0
    %v339 = vmax.f32 %v291, 0.0
    %v340 = vmax.f32 %v296, 0.0
    %v341 = vmax.f32 %v299, 0.0
    %v342 = vmax.f32 %v304, 0.0
    %v343 = vmax.f32 %v307, 0.0
    %v344 = vmax.f32 %v312, 0.0
    %v345 = vmax.f32 %v315, 0.0
    %v346 = vmax.f32 %v320, 0.0
    %v347 = vmax.f32 %v323, 0.0
    %v348 = vmax.f32 %v328, 0.0
    %v349 = vmax.f32 %v331, 0.0
    %v350 = vpack.c.bf16 %v335, %v334
    %v351 = vpack.c.bf16 %v337, %v336
    %v352 = vpack.c.bf16 %v339, %v338
    %v353 = vpack.c.bf16 %v341, %v340
    %v354 = vpack.c.bf16 %v343, %v342
    %v355 = vpack.c.bf16 %v345, %v344
    %v356 = vpack.c.bf16 %v347, %v346
    %v357 = vpack.c.bf16 %v349, %v348
    %v358 = vld [vmem:[%s5] sm:$0xf]
    %v359 = vld [vmem:[%s5 + $0x4] sm:$0xf]
    %v360 = vld [vmem:[%s5 + $0x8] sm:$0xf]
    %v361 = vld [vmem:[%s5 + $0xc] sm:$0xf]
    %v362 = vld [vmem:[%s5 + $0x10] sm:$0xf]
    %v363 = vld [vmem:[%s5 + $0x14] sm:$0xf]
    %v364 = vld [vmem:[%s5 + $0x18] sm:$0xf]
    %v365 = vld [vmem:[%s5 + $0x1c] sm:$0xf]
    %v366 = vld [vmem:[%s5 + $0x20] sm:$0xf]
    %v367 = vld [vmem:[%s5 + $0x24] sm:$0xf]
    %v368 = vld [vmem:[%s5 + $0x28] sm:$0xf]
    %v369 = vld [vmem:[%s5 + $0x2c] sm:$0xf]
    %v370 = vld [vmem:[%s5 + $0x30] sm:$0xf]
    %v371 = vld [vmem:[%s5 + $0x34] sm:$0xf]
    %v372 = vld [vmem:[%s5 + $0x38] sm:$0xf]
    %v373 = vld [vmem:[%s5 + $0x3c] sm:$0xf]
    %v374 = vld [vmem:[%s6] sm:$0x1]
    %v376 = vlaneseq
    %v377 = vshrl.u32 %v376, 7
    %v378 = vsub.s32 0, %v377
    %v379 = vrot.slane %v374, %v378
    %v397 = vunpack.c.l.b16 %v358
    %v398 = vunpack.c.l.b16 %v359
    %v399 = vunpack.c.l.b16 %v360
    %v400 = vunpack.c.l.b16 %v361
    %v401 = vunpack.c.l.b16 %v362
    %v402 = vunpack.c.l.b16 %v363
    %v403 = vunpack.c.l.b16 %v364
    %v404 = vunpack.c.l.b16 %v365
    %v405 = vunpack.c.l.b16 %v366
    %v406 = vunpack.c.l.b16 %v367
    %v407 = vunpack.c.l.b16 %v368
    %v408 = vunpack.c.l.b16 %v369
    %v409 = vunpack.c.l.b16 %v370
    %v410 = vunpack.c.l.b16 %v371
    %v411 = vunpack.c.l.b16 %v372
    %v412 = vunpack.c.l.b16 %v373
    %v413 = vpack.c.b16 %v398, %v397
    %v414 = vpack.c.b16 %v400, %v399
    %v415 = vpack.c.b16 %v402, %v401
    %v416 = vpack.c.b16 %v404, %v403
    %v417 = vpack.c.b16 %v406, %v405
    %v418 = vpack.c.b16 %v408, %v407
    %v419 = vpack.c.b16 %v410, %v409
    %v420 = vpack.c.b16 %v412, %v411
    %429 = vmatprep.subr.bf16.mxu0 0
    %430 = vmatpush1.bf16.msra.mxu0 %v413
    %431 = vmatprep.subr.bf16.mxu0 0
    %432 = vmatpush1.bf16.msra.mxu0 %v414
    %433 = vmatprep.subr.bf16.mxu0 0
    %434 = vmatpush1.bf16.msra.mxu0 %v415
    %435 = vmatprep.subr.bf16.mxu0 0
    %436 = vmatpush1.bf16.msra.mxu0 %v416
    %437 = vmatprep.subr.bf16.mxu0 0
    %438 = vmatpush1.bf16.msra.mxu0 %v417
    %439 = vmatprep.subr.bf16.mxu0 0
    %440 = vmatpush1.bf16.msra.mxu0 %v418
    %441 = vmatprep.subr.bf16.mxu0 0
    %442 = vmatpush1.bf16.msra.mxu0 %v419
    %443 = vmatprep.subr.bf16.mxu0 0
    %444 = vmatpush1.bf16.msra.mxu0 %v420
    %445 = vmatprep.subr.bf16.mxu0 0
    %446 = vmatpush1.bf16.msra.mxu0 0
    %447 = vmatprep.subr.bf16.mxu0 0
    %448 = vmatpush1.bf16.msra.mxu0 0
    %449 = vmatprep.subr.bf16.mxu0 0
    %450 = vmatpush1.bf16.msra.mxu0 0
    %451 = vmatprep.subr.bf16.mxu0 0
    %452 = vmatpush1.bf16.msra.mxu0 0
    %453 = vmatprep.subr.bf16.mxu0 0
    %454 = vmatpush1.bf16.msra.mxu0 0
    %455 = vmatprep.subr.bf16.mxu0 0
    %456 = vmatpush1.bf16.msra.mxu0 0
    %457 = vmatprep.subr.bf16.mxu0 0
    %458 = vmatpush1.bf16.msra.mxu0 0
    %459 = vmatprep.subr.bf16.mxu0 0
    %460 = vmatpush1.bf16.msra.mxu0 0
    %461 = vmatprep.mubr.bf16.mxu0 0
    %462 = vmatmul.mubr.bf16.gmra.mrb[0].mxu0 %v350
    %v463 = vpop.f32.mrb[0].mxu0
    %v464 = vadd.f32 %v379, %v463
    %v465 = vpop.f32.mrb[0].mxu0
    %v466 = vpop.f32.mrb[0].mxu0
    %v467 = vadd.f32 %v379, %v466
    %v468 = vpop.f32.mrb[0].mxu0
    %469 = vmatprep.mubr.bf16.mxu0 0
    %470 = vmatmul.mubr.bf16.gmra.mrb[0].mxu0 %v351
    %v471 = vpop.f32.mrb[0].mxu0
    %v472 = vadd.f32 %v379, %v471
    %v473 = vpop.f32.mrb[0].mxu0
    %v474 = vpop.f32.mrb[0].mxu0
    %v475 = vadd.f32 %v379, %v474
    %v476 = vpop.f32.mrb[0].mxu0
    %477 = vmatprep.mubr.bf16.mxu0 0
    %478 = vmatmul.mubr.bf16.gmra.mrb[0].mxu0 %v352
    %v479 = vpop.f32.mrb[0].mxu0
    %v480 = vadd.f32 %v379, %v479
    %v481 = vpop.f32.mrb[0].mxu0
    %v482 = vpop.f32.mrb[0].mxu0
    %v483 = vadd.f32 %v379, %v482
    %v484 = vpop.f32.mrb[0].mxu0
    %485 = vmatprep.mubr.bf16.mxu0 0
    %486 = vmatmul.mubr.bf16.gmra.mrb[0].mxu0 %v353
    %v487 = vpop.f32.mrb[0].mxu0
    %v488 = vadd.f32 %v379, %v487
    %v489 = vpop.f32.mrb[0].mxu0
    %v490 = vpop.f32.mrb[0].mxu0
    %v491 = vadd.f32 %v379, %v490
    %v492 = vpop.f32.mrb[0].mxu0
    %493 = vmatprep.mubr.bf16.mxu0 0
    %494 = vmatmul.mubr.bf16.gmra.mrb[0].mxu0 %v354
    %v495 = vpop.f32.mrb[0].mxu0
    %v496 = vadd.f32 %v379, %v495
    %v497 = vpop.f32.mrb[0].mxu0
    %v498 = vpop.f32.mrb[0].mxu0
    %v499 = vadd.f32 %v379, %v498
    %v500 = vpop.f32.mrb[0].mxu0
    %501 = vmatprep.mubr.bf16.mxu0 0
    %502 = vmatmul.mubr.bf16.gmra.mrb[0].mxu0 %v355
    %v503 = vpop.f32.mrb[0].mxu0
    %v504 = vadd.f32 %v379, %v503
    %v505 = vpop.f32.mrb[0].mxu0
    %v506 = vpop.f32.mrb[0].mxu0
    %v507 = vadd.f32 %v379, %v506
    %v508 = vpop.f32.mrb[0].mxu0
    %509 = vmatprep.mubr.bf16.mxu0 0
    %510 = vmatmul.mubr.bf16.gmra.mrb[0].mxu0 %v356
    %v511 = vpop.f32.mrb[0].mxu0
    %v512 = vadd.f32 %v379, %v511
    %v513 = vpop.f32.mrb[0].mxu0
    %v514 = vpop.f32.mrb[0].mxu0
    %v515 = vadd.f32 %v379, %v514
    %v516 = vpop.f32.mrb[0].mxu0
    %517 = vmatprep.mubr.bf16.mxu0 0
    %518 = vmatmul.mubr.bf16.gmra.mrb[0].mxu0 %v357
    %v519 = vpop.f32.mrb[0].mxu0
    %v520 = vadd.f32 %v379, %v519
    %v521 = vpop.f32.mrb[0].mxu0
    %v522 = vpop.f32.mrb[0].mxu0
    %v523 = vadd.f32 %v379, %v522
    %v524 = vpop.f32.mrb[0].mxu0
    %525 = vdwg.mxu0
    %v526 = vmax.f32 %v464, 0.0
    %v527 = vmax.f32 %v467, 0.0
    %v528 = vmax.f32 %v472, 0.0
    %v529 = vmax.f32 %v475, 0.0
    %v530 = vmax.f32 %v480, 0.0
    %v531 = vmax.f32 %v483, 0.0
    %v532 = vmax.f32 %v488, 0.0
    %v533 = vmax.f32 %v491, 0.0
    %v534 = vmax.f32 %v496, 0.0
    %v535 = vmax.f32 %v499, 0.0
    %v536 = vmax.f32 %v504, 0.0
    %v537 = vmax.f32 %v507, 0.0
    %v538 = vmax.f32 %v512, 0.0
    %v539 = vmax.f32 %v515, 0.0
    %v540 = vmax.f32 %v520, 0.0
    %v541 = vmax.f32 %v523, 0.0
    %v542 = vld [vmem:[%s7] sm:$0x1]
    %v544 = vlaneseq
    %v545 = vshrl.u32 %v544, 7
    %v546 = vsub.s32 0, %v545
    %v547 = vrot.slane %v542, %v546
    %v549 = vmul.f32 %v526, %v547
    %v550 = vmul.f32 %v527, %v547
    %v551 = vmul.f32 %v528, %v547
    %v552 = vmul.f32 %v529, %v547
    %v553 = vmul.f32 %v530, %v547
    %v554 = vmul.f32 %v531, %v547
    %v555 = vmul.f32 %v532, %v547
    %v556 = vmul.f32 %v533, %v547
    %v557 = vmul.f32 %v534, %v547
    %v558 = vmul.f32 %v535, %v547
    %v559 = vmul.f32 %v536, %v547
    %v560 = vmul.f32 %v537, %v547
    %v561 = vmul.f32 %v538, %v547
    %v562 = vmul.f32 %v539, %v547
    %v563 = vmul.f32 %v540, %v547
    %v564 = vmul.f32 %v541, %v547
    %v565 = vsel %vm212, %v549, 0.0
    %566 = vadd.xlane.f32.xlu0 %v565
    %v567 = vpop.xlane.xlu0 %566
    %v568 = vsel %vm212, %v550, 0.0
    %569 = vadd.xlane.f32.xlu0 %v568
    %v570 = vpop.xlane.xlu0 %569
    %v571 = vsel %vm212, %v551, 0.0
    %572 = vadd.xlane.f32.xlu0 %v571
    %v573 = vpop.xlane.xlu0 %572
    %v574 = vsel %vm212, %v552, 0.0
    %575 = vadd.xlane.f32.xlu0 %v574
    %v576 = vpop.xlane.xlu0 %575
    %v577 = vsel %vm212, %v553, 0.0
    %578 = vadd.xlane.f32.xlu0 %v577
    %v579 = vpop.xlane.xlu0 %578
    %v580 = vsel %vm212, %v554, 0.0
    %581 = vadd.xlane.f32.xlu0 %v580
    %v582 = vpop.xlane.xlu0 %581
    %v583 = vsel %vm212, %v555, 0.0
    %584 = vadd.xlane.f32.xlu0 %v583
    %v585 = vpop.xlane.xlu0 %584
    %v586 = vsel %vm212, %v556, 0.0
    %587 = vadd.xlane.f32.xlu0 %v586
    %v588 = vpop.xlane.xlu0 %587
    %v589 = vsel %vm212, %v557, 0.0
    %590 = vadd.xlane.f32.xlu0 %v589
    %v591 = vpop.xlane.xlu0 %590
    %v592 = vsel %vm212, %v558, 0.0
    %593 = vadd.xlane.f32.xlu0 %v592
    %v594 = vpop.xlane.xlu0 %593
    %v595 = vsel %vm212, %v559, 0.0
    %596 = vadd.xlane.f32.xlu0 %v595
    %v597 = vpop.xlane.xlu0 %596
    %v598 = vsel %vm212, %v560, 0.0
    %599 = vadd.xlane.f32.xlu0 %v598
    %v600 = vpop.xlane.xlu0 %599
    %v601 = vsel %vm212, %v561, 0.0
    %602 = vadd.xlane.f32.xlu0 %v601
    %v603 = vpop.xlane.xlu0 %602
    %v604 = vsel %vm212, %v562, 0.0
    %605 = vadd.xlane.f32.xlu0 %v604
    %v606 = vpop.xlane.xlu0 %605
    %v607 = vsel %vm212, %v563, 0.0
    %608 = vadd.xlane.f32.xlu0 %v607
    %v609 = vpop.xlane.xlu0 %608
    %v610 = vsel %vm212, %v564, 0.0
    %611 = vadd.xlane.f32.xlu0 %v610
    %v612 = vpop.xlane.xlu0 %611
    %s613 = sld [smem:[#allocation2]]
    %v614 = vstv %s613
    %v615 = vadd.f32 %v567, %v614
    %v616 = vadd.f32 %v570, %v614
    %v617 = vadd.f32 %v573, %v614
    %v618 = vadd.f32 %v576, %v614
    %v619 = vadd.f32 %v579, %v614
    %v620 = vadd.f32 %v582, %v614
    %v621 = vadd.f32 %v585, %v614
    %v622 = vadd.f32 %v588, %v614
    %v623 = vadd.f32 %v591, %v614
    %v624 = vadd.f32 %v594, %v614
    %v625 = vadd.f32 %v597, %v614
    %v626 = vadd.f32 %v600, %v614
    %v627 = vadd.f32 %v603, %v614
    %v628 = vadd.f32 %v606, %v614
    %v629 = vadd.f32 %v609, %v614
    %v630 = vadd.f32 %v612, %v614
    %v647 = vlaneseq
    %v648 = vand.u32 %v647, 127
    %v649 = vlaneseq
    %v650 = vshrl.u32 %v649, 7
    %v651 = vsub.s32 %v648, %v650
    %v652 = vrot.slane %v615, %v651
    %v653 = vadd.s32 %v648, 4294967288
    %v654 = vlaneseq
    %v655 = vshrl.u32 %v654, 7
    %v656 = vsub.s32 %v653, %v655
    %v657 = vrot.slane %v616, %v656
    %vm658 = vcmask 130112
    %v659 = vsel %vm658, %v657, %v652
    %v660 = vadd.s32 %v648, 4294967280
    %v661 = vlaneseq
    %v662 = vshrl.u32 %v661, 7
    %v663 = vsub.s32 %v660, %v662
    %v664 = vrot.slane %v617, %v663
    %vm665 = vcmask 195712
    %v666 = vsel %vm665, %v664, %v659
    %v667 = vadd.s32 %v648, 4294967272
    %v668 = vlaneseq
    %v669 = vshrl.u32 %v668, 7
    %v670 = vsub.s32 %v667, %v669
    %v671 = vrot.slane %v618, %v670
    %vm672 = vcmask 261312
    %v673 = vsel %vm672, %v671, %v666
    %v674 = vadd.s32 %v648, 4294967264
    %v675 = vlaneseq
    %v676 = vshrl.u32 %v675, 7
    %v677 = vsub.s32 %v674, %v676
    %v678 = vrot.slane %v619, %v677
    %vm679 = vcmask 326912
    %v680 = vsel %vm679, %v678, %v673
    %v681 = vadd.s32 %v648, 4294967256
    %v682 = vlaneseq
    %v683 = vshrl.u32 %v682, 7
    %v684 = vsub.s32 %v681, %v683
    %v685 = vrot.slane %v620, %v684
    %vm686 = vcmask 392512
    %v687 = vsel %vm686, %v685, %v680
    %v688 = vadd.s32 %v648, 4294967248
    %v689 = vlaneseq
    %v690 = vshrl.u32 %v689, 7
    %v691 = vsub.s32 %v688, %v690
    %v692 = vrot.slane %v621, %v691
    %vm693 = vcmask 458112
    %v694 = vsel %vm693, %v692, %v687
    %v695 = vadd.s32 %v648, 4294967240
    %v696 = vlaneseq
    %v697 = vshrl.u32 %v696, 7
    %v698 = vsub.s32 %v695, %v697
    %v699 = vrot.slane %v622, %v698
    %vm700 = vcmask 523712
    %v701 = vsel %vm700, %v699, %v694
    %v702 = vadd.s32 %v648, 4294967232
    %v703 = vlaneseq
    %v704 = vshrl.u32 %v703, 7
    %v705 = vsub.s32 %v702, %v704
    %v706 = vrot.slane %v623, %v705
    %vm707 = vcmask 589312
    %v708 = vsel %vm707, %v706, %v701
    %v709 = vadd.s32 %v648, 4294967224
    %v710 = vlaneseq
    %v711 = vshrl.u32 %v710, 7
    %v712 = vsub.s32 %v709, %v711
    %v713 = vrot.slane %v624, %v712
    %vm714 = vcmask 654912
    %v715 = vsel %vm714, %v713, %v708
    %v716 = vadd.s32 %v648, 4294967216
    %v717 = vlaneseq
    %v718 = vshrl.u32 %v717, 7
    %v719 = vsub.s32 %v716, %v718
    %v720 = vrot.slane %v625, %v719
    %vm721 = vcmask 720512
    %v722 = vsel %vm721, %v720, %v715
    %v723 = vadd.s32 %v648, 4294967208
    %v724 = vlaneseq
    %v725 = vshrl.u32 %v724, 7
    %v726 = vsub.s32 %v723, %v725
    %v727 = vrot.slane %v626, %v726
    %vm728 = vcmask 786112
    %v729 = vsel %vm728, %v727, %v722
    %v730 = vadd.s32 %v648, 4294967200
    %v731 = vlaneseq
    %v732 = vshrl.u32 %v731, 7
    %v733 = vsub.s32 %v730, %v732
    %v734 = vrot.slane %v627, %v733
    %vm735 = vcmask 851712
    %v736 = vsel %vm735, %v734, %v729
    %v737 = vadd.s32 %v648, 4294967192
    %v738 = vlaneseq
    %v739 = vshrl.u32 %v738, 7
    %v740 = vsub.s32 %v737, %v739
    %v741 = vrot.slane %v628, %v740
    %vm742 = vcmask 917312
    %v743 = vsel %vm742, %v741, %v736
    %v744 = vadd.s32 %v648, 4294967184
    %v745 = vlaneseq
    %v746 = vshrl.u32 %v745, 7
    %v747 = vsub.s32 %v744, %v746
    %v748 = vrot.slane %v629, %v747
    %vm749 = vcmask 982912
    %v750 = vsel %vm749, %v748, %v743
    %v751 = vadd.s32 %v648, 4294967176
    %v752 = vlaneseq
    %v753 = vshrl.u32 %v752, 7
    %v754 = vsub.s32 %v751, %v753
    %v755 = vrot.slane %v630, %v754
    %vm756 = vcmask 1048512
    %v757 = vsel %vm756, %v755, %v750
    %759 = vst [vmem:[#allocation3] sm:$0x1] %v757
    // Predicated region
    $region38: #{tpu_custom_call.1} parent=1 // pred_check
      _
    $region39: #{tpu_custom_call.1} parent=1 // pred_check_branch
      %761 = sbr.rel (0) target = $region41
    $region40: #{tpu_custom_call.1} parent=1 // pred_region
      %s763 = ssub.s32 16, 16
      %764 = vsyncadd [#allocation4], %s763
      %s766 = sshll.u32 [#allocation3], 4
      %s767 = int_to_ptr.vmem [resolvable:$true] %s766
      %769 = dma.vmem_to_hbm [thread:$0]  %s767, 16, %s9, [#allocation4]
    $region41: #{tpu_custom_call.1} parent=1 // pred_fallthru
      _
    // Predicated region
    $region42: #{tpu_custom_call.1} parent=1 // pred_check
      _
    $region43: #{tpu_custom_call.1} parent=1 // pred_check_branch
      %771 = sbr.rel (0) target = $region45
    $region44: #{tpu_custom_call.1} parent=1 // pred_region
      %772 = dma.done [#allocation4], 16
    $region45: #{tpu_custom_call.1} parent=1 // pred_fallthru
      _
    %773 = vsyncpa [#allocation4], 1

</llo_original>
